<compile_context>
chip_gen: v6e
topology: v6e:2x2x1
jax: 0.10.0
libtpu: 0.0.40
codegen_flags: <defaults>
</compile_context>

<pallas_src>
import jax
import jax.numpy as jnp
from jax.experimental import pallas as pl
from jax.experimental.pallas import tpu as pltpu

LANE = 128          # TPU lane width
BF16_SUBLANE = 16   # sublane multiple for bf16-packed rows
OUT_PAD = LANE      # pad the 2-wide output to 128 lanes for lane-dense stores


def _round_up(n, m):
    return (n + m - 1) // m * m


def mlp_kernel(x_ref, w1_ref, b1_ref, w2_ref, b2_ref, w3_ref, b3_ref, o_ref):
    # x tile: (TB, 4) bf16.  All dots accumulate in f32 on the MXU; bias adds
    # and ReLU run on the f32 accumulator (no bf16 elementwise, v5e-safe).
    x = x_ref[...]

    h1 = jnp.dot(x, w1_ref[...], preferred_element_type=jnp.float32) + b1_ref[...]
    h1 = jnp.maximum(h1, 0.0)

    h2 = jnp.dot(h1.astype(jnp.bfloat16), w2_ref[...],
                 preferred_element_type=jnp.float32) + b2_ref[...]
    h2 = jnp.maximum(h2, 0.0)

    out = jnp.dot(h2.astype(jnp.bfloat16), w3_ref[...],
                  preferred_element_type=jnp.float32) + b3_ref[...]
    o_ref[...] = out  # (TB, 128) f32 — unmasked, lane-dense store


def dqfd_forward(x, params, *, block_rows=512):
    """x: (B, 4) f32. Returns (B, 2) f32 Q-values."""
    w1, b1, w2, b2, w3, b3 = params
    B, in_dim = x.shape
    out_dim = w3.shape[1]  # 2

    # Pad last layer to 128 output columns (zeros) -> lane-dense output.
    w3p = jnp.zeros((w3.shape[0], OUT_PAD), jnp.float32).at[:, :out_dim].set(w3)
    b3p = jnp.zeros((1, OUT_PAD), jnp.float32).at[:, :out_dim].set(b3)

    # bf16 matmul operands (biases stay f32).
    x_bf = x.astype(jnp.bfloat16)
    w1b = w1.astype(jnp.bfloat16)
    w2b = w2.astype(jnp.bfloat16)
    w3b = w3p.astype(jnp.bfloat16)

    # Batch tile: multiple of 16 sublanes (bf16 packing), capped at batch size.
    tb = min(_round_up(block_rows, BF16_SUBLANE), _round_up(B, BF16_SUBLANE))
    b_pad = _round_up(B, tb)
    if b_pad != B:
        x_bf = jnp.pad(x_bf, ((0, b_pad - B), (0, 0)))

    grid = (b_pad // tb,)

    # Weights/biases: full-array blocks with constant index_map -> fetched
    # once, VMEM-resident across all grid steps.
    resident = lambda a: pl.BlockSpec(a.shape, lambda i: (0, 0))

    out = pl.pallas_call(
        mlp_kernel,
        out_shape=jax.ShapeDtypeStruct((b_pad, OUT_PAD), jnp.float32),
        grid=grid,
        in_specs=[
            pl.BlockSpec((tb, in_dim), lambda i: (i, 0)),   # x: streamed tiles
            resident(w1b), resident(b1),
            resident(w2b), resident(b2),
            resident(w3b), resident(b3p),
        ],
        out_specs=pl.BlockSpec((tb, OUT_PAD), lambda i: (i, 0)),
        compiler_params=pltpu.CompilerParams(
            dimension_semantics=("parallel",)),  # shard batch across TCs (v7x)
    )(x_bf, w1b, b1, w2b, b2, w3b, b3p)

    return out[:B, :out_dim]


def init_params(key):
    """Deterministic init mimicking PyTorch nn.Linear (uniform +/- 1/sqrt(fan_in)).
    Weights stored (in_features, out_features) — i.e. transposed vs torch."""
    dims = [(4, 32), (32, 64), (64, 2)]
    params = []
    for (fan_in, fan_out) in dims:
        key, kw, kb = jax.random.split(key, 3)
        bound = 1.0 / jnp.sqrt(fan_in)
        w = jax.random.uniform(kw, (fan_in, fan_out), jnp.float32, -bound, bound)
        b = jax.random.uniform(kb, (1, fan_out), jnp.float32, -bound, bound)
        params.extend([w, b])
    return tuple(params)


def reference_forward(x, params):
    w1, b1, w2, b2, w3, b3 = params
    h1 = jax.nn.relu(x @ w1 + b1)
    h2 = jax.nn.relu(h1 @ w2 + b2)
    return h2 @ w3 + b3


if __name__ == "__main__":
    key = jax.random.PRNGKey(0)
    key, kx1, kx2 = jax.random.split(key, 3)
    params = init_params(key)

    # Small case: CartPole state dim = 4, batch = 8 (single grid step).
    x_small = jax.random.normal(kx1, (8, 4), jnp.float32)
    out_small = jax.block_until_ready(dqfd_forward(x_small, params))
    ref_small = reference_forward(x_small, params)
    assert out_small.shape == (8, 2), out_small.shape
    # bf16 matmul operands -> loose tolerance vs f32 reference.
    assert jnp.allclose(out_small, ref_small, atol=3e-2, rtol=3e-2), "mismatch (B=8)"

    # Larger, non-multiple batch to exercise the batch grid + padding path.
    x_big = jax.random.normal(kx2, (300, 4), jnp.float32)
    out_big = jax.block_until_ready(dqfd_forward(x_big, params, block_rows=128))
    ref_big = reference_forward(x_big, params)
    assert out_big.shape == (300, 2), out_big.shape
    assert jnp.allclose(out_big, ref_big, atol=3e-2, rtol=3e-2), "mismatch (B=300)"

    print("KERNEL_OK")
</pallas_src>

<mosaic_0001>
module attributes {stable_mosaic.version = 11 : i64} {
  func.func @mlp_kernel(%arg0: i32, %arg1: memref<16x4xbf16, #tpu.memory_space<vmem>>, %arg2: memref<4x32xbf16, #tpu.memory_space<vmem>>, %arg3: memref<1x32xf32, #tpu.memory_space<vmem>>, %arg4: memref<32x64xbf16, #tpu.memory_space<vmem>>, %arg5: memref<1x64xf32, #tpu.memory_space<vmem>>, %arg6: memref<64x128xbf16, #tpu.memory_space<vmem>>, %arg7: memref<1x128xf32, #tpu.memory_space<vmem>>, %arg8: memref<16x128xf32, #tpu.memory_space<vmem>>) attributes {dimension_semantics = [#tpu.dimension_semantics<parallel>], iteration_bounds = array<i64: 1>, scalar_prefetch = 0 : i64, scratch_operands = 0 : i64, tpu.core_type = #tpu.core_type<tc>, window_params = [{transform_indices = @transform_0, window_bounds = array<i64: 16, 4>}, {pipeline_mode = #tpu.pipeline_mode<synchronous>, transform_indices = @transform_1, window_bounds = array<i64: 4, 32>}, {pipeline_mode = #tpu.pipeline_mode<synchronous>, transform_indices = @transform_2, window_bounds = array<i64: 1, 32>}, {pipeline_mode = #tpu.pipeline_mode<synchronous>, transform_indices = @transform_3, window_bounds = array<i64: 32, 64>}, {pipeline_mode = #tpu.pipeline_mode<synchronous>, transform_indices = @transform_4, window_bounds = array<i64: 1, 64>}, {pipeline_mode = #tpu.pipeline_mode<synchronous>, transform_indices = @transform_5, window_bounds = array<i64: 64, 128>}, {pipeline_mode = #tpu.pipeline_mode<synchronous>, transform_indices = @transform_6, window_bounds = array<i64: 1, 128>}, {transform_indices = @transform_7, window_bounds = array<i64: 16, 128>}]} {
    %c0 = arith.constant 0 : index
    %c0_0 = arith.constant 0 : index
    %0 = vector.load %arg1[%c0, %c0_0] : memref<16x4xbf16, #tpu.memory_space<vmem>>, vector<16x4xbf16>
    %c0_1 = arith.constant 0 : index
    %c0_2 = arith.constant 0 : index
    %1 = vector.load %arg2[%c0_1, %c0_2] : memref<4x32xbf16, #tpu.memory_space<vmem>>, vector<4x32xbf16>
    %cst = arith.constant dense<0.000000e+00> : vector<16x32xf32>
    %2 = tpu.matmul %0, %1, %cst {dimension_numbers = #tpu.dot_dimension_numbers<[1], [0], [0], [1], [0, 0, 1, 1], [], []>} : vector<16x4xbf16>, vector<4x32xbf16>, vector<16x32xf32> -> vector<16x32xf32>
    %c0_3 = arith.constant 0 : index
    %c0_4 = arith.constant 0 : index
    %3 = vector.load %arg3[%c0_3, %c0_4] : memref<1x32xf32, #tpu.memory_space<vmem>>, vector<1x32xf32>
    %4 = vector.broadcast %3 : vector<1x32xf32> to vector<16x32xf32>
    %5 = arith.addf %2, %4 : vector<16x32xf32>
    %cst_5 = arith.constant 0.000000e+00 : f32
    %6 = vector.broadcast %cst_5 : f32 to vector<16x32xf32>
    %7 = arith.maximumf %5, %6 : vector<16x32xf32>
    %8 = arith.truncf %7 : vector<16x32xf32> to vector<16x32xbf16>
    %c0_6 = arith.constant 0 : index
    %c0_7 = arith.constant 0 : index
    %9 = vector.load %arg4[%c0_6, %c0_7] : memref<32x64xbf16, #tpu.memory_space<vmem>>, vector<32x64xbf16>
    %cst_8 = arith.constant dense<0.000000e+00> : vector<16x64xf32>
    %10 = tpu.matmul %8, %9, %cst_8 {dimension_numbers = #tpu.dot_dimension_numbers<[1], [0], [0], [1], [0, 0, 1, 1], [], []>} : vector<16x32xbf16>, vector<32x64xbf16>, vector<16x64xf32> -> vector<16x64xf32>
    %c0_9 = arith.constant 0 : index
    %c0_10 = arith.constant 0 : index
    %11 = vector.load %arg5[%c0_9, %c0_10] : memref<1x64xf32, #tpu.memory_space<vmem>>, vector<1x64xf32>
    %12 = vector.broadcast %11 : vector<1x64xf32> to vector<16x64xf32>
    %13 = arith.addf %10, %12 : vector<16x64xf32>
    %cst_11 = arith.constant 0.000000e+00 : f32
    %14 = vector.broadcast %cst_11 : f32 to vector<16x64xf32>
    %15 = arith.maximumf %13, %14 : vector<16x64xf32>
    %16 = arith.truncf %15 : vector<16x64xf32> to vector<16x64xbf16>
    %c0_12 = arith.constant 0 : index
    %c0_13 = arith.constant 0 : index
    %17 = vector.load %arg6[%c0_12, %c0_13] : memref<64x128xbf16, #tpu.memory_space<vmem>>, vector<64x128xbf16>
    %cst_14 = arith.constant dense<0.000000e+00> : vector<16x128xf32>
    %18 = tpu.matmul %16, %17, %cst_14 {dimension_numbers = #tpu.dot_dimension_numbers<[1], [0], [0], [1], [0, 0, 1, 1], [], []>} : vector<16x64xbf16>, vector<64x128xbf16>, vector<16x128xf32> -> vector<16x128xf32>
    %c0_15 = arith.constant 0 : index
    %c0_16 = arith.constant 0 : index
    %19 = vector.load %arg7[%c0_15, %c0_16] : memref<1x128xf32, #tpu.memory_space<vmem>>, vector<1x128xf32>
    %20 = vector.broadcast %19 : vector<1x128xf32> to vector<16x128xf32>
    %21 = arith.addf %18, %20 : vector<16x128xf32>
    %c0_17 = arith.constant 0 : index
    %c0_18 = arith.constant 0 : index
    %22 = vector.load %arg8[%c0_17, %c0_18] : memref<16x128xf32, #tpu.memory_space<vmem>>, vector<16x128xf32>
    tpu.vector_store %arg8[%c0_17, %c0_18], %21 {strides = array<i32>} : memref<16x128xf32, #tpu.memory_space<vmem>>, vector<16x128xf32>,
    return
  }
  func.func @transform_0(%arg0: i32) -> (i32, i32) {
    %c0_i32 = arith.constant 0 : i32
    %c0_i32_0 = arith.constant 0 : i32
    return %arg0, %c0_i32 : i32, i32
  }
  func.func @transform_1(%arg0: i32) -> (i32, i32) {
    %c0_i32 = arith.constant 0 : i32
    %c0_i32_0 = arith.constant 0 : i32
    %c0_i32_1 = arith.constant 0 : i32
    return %c0_i32, %c0_i32_0 : i32, i32
  }
  func.func @transform_2(%arg0: i32) -> (i32, i32) {
    %c0_i32 = arith.constant 0 : i32
    %c0_i32_0 = arith.constant 0 : i32
    %c0_i32_1 = arith.constant 0 : i32
    return %c0_i32, %c0_i32_0 : i32, i32
  }
  func.func @transform_3(%arg0: i32) -> (i32, i32) {
    %c0_i32 = arith.constant 0 : i32
    %c0_i32_0 = arith.constant 0 : i32
    %c0_i32_1 = arith.constant 0 : i32
    return %c0_i32, %c0_i32_0 : i32, i32
  }
  func.func @transform_4(%arg0: i32) -> (i32, i32) {
    %c0_i32 = arith.constant 0 : i32
    %c0_i32_0 = arith.constant 0 : i32
    %c0_i32_1 = arith.constant 0 : i32
    return %c0_i32, %c0_i32_0 : i32, i32
  }
  func.func @transform_5(%arg0: i32) -> (i32, i32) {
    %c0_i32 = arith.constant 0 : i32
    %c0_i32_0 = arith.constant 0 : i32
    %c0_i32_1 = arith.constant 0 : i32
    return %c0_i32, %c0_i32_0 : i32, i32
  }
  func.func @transform_6(%arg0: i32) -> (i32, i32) {
    %c0_i32 = arith.constant 0 : i32
    %c0_i32_0 = arith.constant 0 : i32
    %c0_i32_1 = arith.constant 0 : i32
    return %c0_i32, %c0_i32_0 : i32, i32
  }
  func.func @transform_7(%arg0: i32) -> (i32, i32) {
    %c0_i32 = arith.constant 0 : i32
    %c0_i32_0 = arith.constant 0 : i32
    return %arg0, %c0_i32 : i32, i32
  }
}

</mosaic_0001>

<llo_original>
// kernel: tpu_custom_call.1
$region0: #{tpu_custom_call.1}
  #allocation0 [shape = 'u32[]', space=smem, size = 0x4, offset = 0x4, fixed_abs, tag = 'smem constant byte address 0x4 - core index']
  #allocation1 [shape = 'u32[144,128]{1,0:T(1,128)}', space=vmem, size = 0x12000, scoped, tag = 'internal scratch']
  %s0 = inlined_call_operand.vmem [shape: bf16[16,4], index: 0, kind: input, shape index: {}]
  %s1 = inlined_call_operand.vmem [shape: bf16[4,32], index: 1, kind: input, shape index: {}]
  %s2 = inlined_call_operand.vmem [shape: f32[1,32], index: 2, kind: input, shape index: {}]
  %s3 = inlined_call_operand.hbm [shape: bf16[32,64], index: 3, kind: input, shape index: {}]
  %s4 = inlined_call_operand.vmem [shape: f32[1,64], index: 4, kind: input, shape index: {}]
  %s5 = inlined_call_operand.hbm [shape: bf16[64,128], index: 5, kind: input, shape index: {}]
  %s6 = inlined_call_operand.vmem [shape: f32[1,128], index: 6, kind: input, shape index: {}]
  %s7 = inlined_call_operand.hbm [shape: f32[16,128], index: 7, kind: output, shape index: {}]
  %s8 = sld [smem:[#allocation0]]
  $region46: #{tpu_custom_call.1} parent=0
    _
  %s10 = ssub.s32 1, %s8
  %s11 = scalar_select 0, %s10, %s8
  $region1: #{tpu_custom_call.1} parent=0
    #allocation2 [shape = 'u8[8192]{0}', space=vmem, size = 0x2000, scoped, tag = 'input window, operand 3, single buffered']
    #allocation3 [shape = 's32[1]{0}', space=sflag, size = 0x4, scoped, tag = 'scoped memory for tpu_custom_call.1']
    #allocation4 [shape = 's32[1]{0}', space=sflag, size = 0x4, scoped, tag = 'scoped memory for tpu_custom_call.1']
    #allocation5 [shape = 'u8[16384]{0}', space=vmem, size = 0x4000, scoped, tag = 'input window, operand 5, single buffered']
    #allocation6 [shape = 's32[1]{0}', space=sflag, size = 0x4, scoped, tag = 'scoped memory for tpu_custom_call.1']
    #allocation7 [shape = 'u8[8192]{0}', space=vmem, size = 0x2000, scoped, tag = 'output window, operand 0, single buffered']
    %12 = vsyncpa [#allocation3], 0
    %13 = vsyncpa [#allocation6], 0
    %14 = vsyncpa [#allocation4], 0
    // Predicated region
    $region2: #{tpu_custom_call.1} parent=1 // pred_check
      _
    $region3: #{tpu_custom_call.1} parent=1 // pred_check_branch
      %16 = sbr.rel (0) target = $region5
    $region4: #{tpu_custom_call.1} parent=1 // pred_region
      _
    $region5: #{tpu_custom_call.1} parent=1 // pred_fallthru
      _
    // Predicated region
    $region6: #{tpu_custom_call.1} parent=1 // pred_check
      _
    $region7: #{tpu_custom_call.1} parent=1 // pred_check_branch
      %18 = sbr.rel (0) target = $region9
    $region8: #{tpu_custom_call.1} parent=1 // pred_region
      _
    $region9: #{tpu_custom_call.1} parent=1 // pred_fallthru
      _
    // Predicated region
    $region10: #{tpu_custom_call.1} parent=1 // pred_check
      _
    $region11: #{tpu_custom_call.1} parent=1 // pred_check_branch
      %20 = sbr.rel (0) target = $region13
    $region12: #{tpu_custom_call.1} parent=1 // pred_region
      _
    $region13: #{tpu_custom_call.1} parent=1 // pred_fallthru
      _
    // Predicated region
    $region14: #{tpu_custom_call.1} parent=1 // pred_check
      _
    $region15: #{tpu_custom_call.1} parent=1 // pred_check_branch
      %22 = sbr.rel (0) target = $region17
    $region16: #{tpu_custom_call.1} parent=1 // pred_region
      %s24 = ssub.s32 256, 256
      %25 = vsyncadd [#allocation3], %s24
      %s26 = sshll.u32 [#allocation2], 4
      %s27 = int_to_ptr.vmem [resolvable:$true] %s26
      %32 = dma.hbm_to_vmem [thread:$0]  %s3, 256, %s27, [#allocation3], 64, 64, 4
    $region17: #{tpu_custom_call.1} parent=1 // pred_fallthru
      _
    // Predicated region
    $region18: #{tpu_custom_call.1} parent=1 // pred_check
      _
    $region19: #{tpu_custom_call.1} parent=1 // pred_check_branch
      %34 = sbr.rel (0) target = $region21
    $region20: #{tpu_custom_call.1} parent=1 // pred_region
      _
    $region21: #{tpu_custom_call.1} parent=1 // pred_fallthru
      _
    // Predicated region
    $region22: #{tpu_custom_call.1} parent=1 // pred_check
      _
    $region23: #{tpu_custom_call.1} parent=1 // pred_check_branch
      %36 = sbr.rel (0) target = $region25
    $region24: #{tpu_custom_call.1} parent=1 // pred_region
      %s38 = ssub.s32 512, 512
      %39 = vsyncadd [#allocation6], %s38
      %s40 = sshll.u32 [#allocation5], 4
      %s41 = int_to_ptr.vmem [resolvable:$true] %s40
      %46 = dma.hbm_to_vmem [thread:$0]  %s5, 512, %s41, [#allocation6], 64, 64, 4
    $region25: #{tpu_custom_call.1} parent=1 // pred_fallthru
      _
    // Predicated region
    $region26: #{tpu_custom_call.1} parent=1 // pred_check
      _
    $region27: #{tpu_custom_call.1} parent=1 // pred_check_branch
      %48 = sbr.rel (0) target = $region29
    $region28: #{tpu_custom_call.1} parent=1 // pred_region
      _
    $region29: #{tpu_custom_call.1} parent=1 // pred_fallthru
      _
    // Predicated region
    $region30: #{tpu_custom_call.1} parent=1 // pred_check
      _
    $region31: #{tpu_custom_call.1} parent=1 // pred_check_branch
      %50 = sbr.rel (0) target = $region33
    $region32: #{tpu_custom_call.1} parent=1 // pred_region
      %51 = dma.done [#allocation3], 256
    $region33: #{tpu_custom_call.1} parent=1 // pred_fallthru
      _
    // Predicated region
    $region34: #{tpu_custom_call.1} parent=1 // pred_check
      _
    $region35: #{tpu_custom_call.1} parent=1 // pred_check_branch
      %53 = sbr.rel (0) target = $region37
    $region36: #{tpu_custom_call.1} parent=1 // pred_region
      %54 = dma.done [#allocation6], 512
    $region37: #{tpu_custom_call.1} parent=1 // pred_fallthru
      _
    %v56 = vld [vmem:[%s0] sm:$0xf]
    %v57 = vld [vmem:[%s0 + $0x4] sm:$0xf]
    %v58 = vld [vmem:[%s1] sm:$0x3]
    %v59 = vld [vmem:[%s2] sm:$0x1]
    %v61 = vlaneseq
    %v62 = vshrl.u32 %v61, 7
    %v63 = vsub.s32 0, %v62
    %v64 = vrot.slane %v59, %v63
    %v68 = vunpack.c.l.b16 %v56
    %v69 = vunpack.c.l.b16 %v57
    %v70 = vpack.c.b16 %v69, %v68
    %vm71 = vcmask 31744
    %v73 = vsel %vm71, %v70, 0
    %vm75 = vcmask 1041408
    %v77 = vsel %vm75, %v58, 0
    %79 = vmatprep.subr.bf16.mxu0 0
    %80 = vmatpush1.bf16.msra.mxu0 0
    %81 = vmatprep.subr.bf16.mxu0 0
    %82 = vmatpush1.bf16.msra.mxu0 0
    %83 = vmatprep.subr.bf16.mxu0 0
    %84 = vmatpush1.bf16.msra.mxu0 0
    %85 = vmatprep.subr.bf16.mxu0 0
    %86 = vmatpush1.bf16.msra.mxu0 0
    %87 = vmatprep.subr.bf16.mxu0 0
    %88 = vmatpush1.bf16.msra.mxu0 0
    %89 = vmatprep.subr.bf16.mxu0 0
    %90 = vmatpush1.bf16.msra.mxu0 0
    %91 = vmatprep.subr.bf16.mxu0 0
    %92 = vmatpush1.bf16.msra.mxu0 0
    %93 = vmatprep.subr.bf16.mxu0 0
    %94 = vmatpush1.bf16.msra.mxu0 %v77
    %95 = vmatprep.subr.bf16.mxu0 0
    %96 = vmatpush2.bf16.msra.mxu0 0
    %97 = vmatprep.subr.bf16.mxu0 0
    %98 = vmatpush2.bf16.msra.mxu0 0
    %99 = vmatprep.subr.bf16.mxu0 0
    %100 = vmatpush2.bf16.msra.mxu0 0
    %101 = vmatprep.subr.bf16.mxu0 0
    %102 = vmatpush2.bf16.msra.mxu0 0
    %103 = vmatprep.subr.bf16.mxu0 0
    %104 = vmatpush2.bf16.msra.mxu0 0
    %105 = vmatprep.subr.bf16.mxu0 0
    %106 = vmatpush2.bf16.msra.mxu0 0
    %107 = vmatprep.subr.bf16.mxu0 0
    %108 = vmatpush2.bf16.msra.mxu0 0
    %109 = vmatprep.subr.bf16.mxu0 0
    %110 = vmatpush2.bf16.msra.mxu0 0
    %111 = vmatprep.mubr.bf16.mxu0 0
    %112 = vmatmul.mubr.bf16.gmra.mxu0 %v73
    %v113 = vpop.f32.mrf.mxu0
    %v114 = vadd.f32 %v64, %v113
    %v115 = vpop.f32.mrf.mxu0
    %v116 = vpop.f32.mrf.mxu0
    %v117 = vadd.f32 %v64, %v116
    %v118 = vpop.f32.mrf.mxu0
    %119 = vdwg.mxu0
    %v120 = vmax.f32 %v114, 0.0
    %v121 = vmax.f32 %v117, 0.0
    %v122 = vpack.c.bf16 %v121, %v120
    %v123 = vld [vmem:[#allocation2] sm:$0xf]
    %v124 = vld [vmem:[#allocation2 + $0x4] sm:$0xf]
    %v125 = vld [vmem:[#allocation2 + $0x8] sm:$0xf]
    %v126 = vld [vmem:[#allocation2 + $0xc] sm:$0xf]
    %v127 = vld [vmem:[%s4] sm:$0x1]
    %v129 = vlaneseq
    %v130 = vshrl.u32 %v129, 7
    %v131 = vsub.s32 0, %v130
    %v132 = vrot.slane %v127, %v131
    %v138 = vunpack.c.l.b16 %v123
    %v139 = vunpack.c.l.b16 %v124
    %v140 = vunpack.c.l.b16 %v125
    %v141 = vunpack.c.l.b16 %v126
    %v142 = vpack.c.b16 %v139, %v138
    %v143 = vpack.c.b16 %v141, %v140
    %vm146 = vcmask 261120
    %v148 = vsel %vm146, %v122, 0
    %150 = vmatprep.subr.bf16.mxu0 0
    %151 = vmatpush1.bf16.msra.mxu0 0
    %152 = vmatprep.subr.bf16.mxu0 0
    %153 = vmatpush1.bf16.msra.mxu0 0
    %154 = vmatprep.subr.bf16.mxu0 0
    %155 = vmatpush1.bf16.msra.mxu0 0
    %156 = vmatprep.subr.bf16.mxu0 0
    %157 = vmatpush1.bf16.msra.mxu0 0
    %158 = vmatprep.subr.bf16.mxu0 0
    %159 = vmatpush1.bf16.msra.mxu0 0
    %160 = vmatprep.subr.bf16.mxu0 0
    %161 = vmatpush1.bf16.msra.mxu0 0
    %162 = vmatprep.subr.bf16.mxu0 0
    %163 = vmatpush1.bf16.msra.mxu0 %v143
    %164 = vmatprep.subr.bf16.mxu0 0
    %165 = vmatpush1.bf16.msra.mxu0 %v142
    %166 = vmatprep.subr.bf16.mxu0 0
    %167 = vmatpush2.bf16.msra.mxu0 0
    %168 = vmatprep.subr.bf16.mxu0 0
    %169 = vmatpush2.bf16.msra.mxu0 0
    %170 = vmatprep.subr.bf16.mxu0 0
    %171 = vmatpush2.bf16.msra.mxu0 0
    %172 = vmatprep.subr.bf16.mxu0 0
    %173 = vmatpush2.bf16.msra.mxu0 0
    %174 = vmatprep.subr.bf16.mxu0 0
    %175 = vmatpush2.bf16.msra.mxu0 0
    %176 = vmatprep.subr.bf16.mxu0 0
    %177 = vmatpush2.bf16.msra.mxu0 0
    %178 = vmatprep.subr.bf16.mxu0 0
    %179 = vmatpush2.bf16.msra.mxu0 0
    %180 = vmatprep.subr.bf16.mxu0 0
    %181 = vmatpush2.bf16.msra.mxu0 0
    %182 = vmatprep.mubr.bf16.mxu0 0
    %183 = vmatmul.mubr.bf16.gmra.mxu0 %v148
    %v184 = vpop.f32.mrf.mxu0
    %v185 = vadd.f32 %v132, %v184
    %v186 = vpop.f32.mrf.mxu0
    %v187 = vpop.f32.mrf.mxu0
    %v188 = vadd.f32 %v132, %v187
    %v189 = vpop.f32.mrf.mxu0
    %190 = vdwg.mxu0
    %v191 = vmax.f32 %v185, 0.0
    %v192 = vmax.f32 %v188, 0.0
    %v193 = vpack.c.bf16 %v192, %v191
    %v194 = vld [vmem:[#allocation5] sm:$0xf]
    %v195 = vld [vmem:[#allocation5 + $0x4] sm:$0xf]
    %v196 = vld [vmem:[#allocation5 + $0x8] sm:$0xf]
    %v197 = vld [vmem:[#allocation5 + $0xc] sm:$0xf]
    %v198 = vld [vmem:[#allocation5 + $0x10] sm:$0xf]
    %v199 = vld [vmem:[#allocation5 + $0x14] sm:$0xf]
    %v200 = vld [vmem:[#allocation5 + $0x18] sm:$0xf]
    %v201 = vld [vmem:[#allocation5 + $0x1c] sm:$0xf]
    %v202 = vld [vmem:[%s6] sm:$0x1]
    %v204 = vlaneseq
    %v205 = vshrl.u32 %v204, 7
    %v206 = vsub.s32 0, %v205
    %v207 = vrot.slane %v202, %v206
    %v217 = vunpack.c.l.b16 %v194
    %v218 = vunpack.c.l.b16 %v195
    %v219 = vunpack.c.l.b16 %v196
    %v220 = vunpack.c.l.b16 %v197
    %v221 = vunpack.c.l.b16 %v198
    %v222 = vunpack.c.l.b16 %v199
    %v223 = vunpack.c.l.b16 %v200
    %v224 = vunpack.c.l.b16 %v201
    %v225 = vpack.c.b16 %v218, %v217
    %v226 = vpack.c.b16 %v220, %v219
    %v227 = vpack.c.b16 %v222, %v221
    %v228 = vpack.c.b16 %v224, %v223
    %vm233 = vcmask 523264
    %v235 = vsel %vm233, %v193, 0
    %237 = vmatprep.subr.bf16.mxu0 0
    %238 = vmatpush1.bf16.msra.mxu0 0
    %239 = vmatprep.subr.bf16.mxu0 0
    %240 = vmatpush1.bf16.msra.mxu0 0
    %241 = vmatprep.subr.bf16.mxu0 0
    %242 = vmatpush1.bf16.msra.mxu0 0
    %243 = vmatprep.subr.bf16.mxu0 0
    %244 = vmatpush1.bf16.msra.mxu0 0
    %245 = vmatprep.subr.bf16.mxu0 0
    %246 = vmatpush1.bf16.msra.mxu0 %v228
    %247 = vmatprep.subr.bf16.mxu0 0
    %248 = vmatpush1.bf16.msra.mxu0 %v227
    %249 = vmatprep.subr.bf16.mxu0 0
    %250 = vmatpush1.bf16.msra.mxu0 %v226
    %251 = vmatprep.subr.bf16.mxu0 0
    %252 = vmatpush1.bf16.msra.mxu0 %v225
    %253 = vmatprep.subr.bf16.mxu0 0
    %254 = vmatpush2.bf16.msra.mxu0 0
    %255 = vmatprep.subr.bf16.mxu0 0
    %256 = vmatpush2.bf16.msra.mxu0 0
    %257 = vmatprep.subr.bf16.mxu0 0
    %258 = vmatpush2.bf16.msra.mxu0 0
    %259 = vmatprep.subr.bf16.mxu0 0
    %260 = vmatpush2.bf16.msra.mxu0 0
    %261 = vmatprep.subr.bf16.mxu0 0
    %262 = vmatpush2.bf16.msra.mxu0 0
    %263 = vmatprep.subr.bf16.mxu0 0
    %264 = vmatpush2.bf16.msra.mxu0 0
    %265 = vmatprep.subr.bf16.mxu0 0
    %266 = vmatpush2.bf16.msra.mxu0 0
    %267 = vmatprep.subr.bf16.mxu0 0
    %268 = vmatpush2.bf16.msra.mxu0 0
    %269 = vmatprep.mubr.bf16.mxu0 0
    %270 = vmatmul.mubr.bf16.gmra.mxu0 %v235
    %v271 = vpop.f32.mrf.mxu0
    %v272 = vadd.f32 %v207, %v271
    %v273 = vpop.f32.mrf.mxu0
    %v274 = vpop.f32.mrf.mxu0
    %v275 = vadd.f32 %v207, %v274
    %v276 = vpop.f32.mrf.mxu0
    %277 = vdwg.mxu0
    %278 = vst [vmem:[#allocation7] sm:$0xff] %v272
    %279 = vst [vmem:[#allocation7 + $0x8] sm:$0xff] %v275
    // Predicated region
    $region38: #{tpu_custom_call.1} parent=1 // pred_check
      _
    $region39: #{tpu_custom_call.1} parent=1 // pred_check_branch
      %281 = sbr.rel (0) target = $region41
    $region40: #{tpu_custom_call.1} parent=1 // pred_region
      %s283 = ssub.s32 256, 256
      %284 = vsyncadd [#allocation4], %s283
      %s285 = sshll.u32 [#allocation7], 4
      %s286 = int_to_ptr.vmem [resolvable:$true] %s285
      %291 = dma.vmem_to_hbm [thread:$0]  %s286, 256, %s7, [#allocation4], 128, 128, 8
    $region41: #{tpu_custom_call.1} parent=1 // pred_fallthru
      _
    // Predicated region
    $region42: #{tpu_custom_call.1} parent=1 // pred_check
      _
    $region43: #{tpu_custom_call.1} parent=1 // pred_check_branch
      %293 = sbr.rel (0) target = $region45
    $region44: #{tpu_custom_call.1} parent=1 // pred_region
      %294 = dma.done [#allocation4], 256
    $region45: #{tpu_custom_call.1} parent=1 // pred_fallthru
      _
    %295 = vsyncpa [#allocation3], 1
    %296 = vsyncpa [#allocation6], 1
    %297 = vsyncpa [#allocation4], 1

</llo_original>
